<compile_context>
chip_gen: v7x
topology: tpu7x:2x2x1
jax: 0.10.0
libtpu: 0.0.40
codegen_flags: <defaults>
</compile_context>

<pallas_src>
import functools

import jax
import jax.numpy as jnp
from jax.experimental import pallas as pl
from jax.experimental.pallas import tpu as pltpu

# ---- offsets of each parameter group inside the packed 1-D SMEM parameter array ----
_W1_OFF = 0       # w1[j, k] at _W1_OFF + j*4 + k     (6 x 4 = 24 floats)
_B1_OFF = 24      # b1[j]    at _B1_OFF + j           (6 floats)
_W2_OFF = 32      # w2[j, k] at _W2_OFF + j*6 + k     (6 x 6 = 36 floats)
_B2_OFF = 68      # b2[j]    at _B2_OFF + j           (6 floats)
_W3_OFF = 74      # w3[0, k] at _W3_OFF + k           (6 floats)
_B3_OFF = 80      # b3[0]    at _B3_OFF               (1 float)
_P_LEN = 128      # padded total length (1-D SMEM: 128 * 4 B -> 512 B)

_MIN_TB = 1024    # tb must be a multiple of 1024 so tb//128 is a multiple of 8


def mlp_kernel(p_ref, x_ref, o_ref):
    """One batch tile.

    p_ref : SMEM (128,) f32   packed parameters (scalar reads)
    x_ref : VMEM (4, S, 128)  per-feature batch-dense slabs, S = tb//128
    o_ref : VMEM (S, 128)     one output value per batch element
    """
    def w1(j, k): return p_ref[_W1_OFF + j * 4 + k]
    def b1(j):    return p_ref[_B1_OFF + j]
    def w2(j, k): return p_ref[_W2_OFF + j * 6 + k]
    def b2(j):    return p_ref[_B2_OFF + j]
    def w3(k):    return p_ref[_W3_OFF + k]
    b3 = p_ref[_B3_OFF]

    # Per-feature batch-dense slabs; every vreg is fully utilized.
    x = [x_ref[k] for k in range(4)]                  # 4 x (S, 128) f32

    # ---- fc1 + ReLU: h1_j = relu(sum_k w1[j,k] * x_k + b1[j]) ----
    h1 = []
    for j in range(6):
        acc = x[0] * w1(j, 0)
        for k in range(1, 4):
            acc = acc + x[k] * w1(j, k)
        h1.append(jnp.maximum(acc + b1(j), 0.0))

    # ---- fc2 + ReLU: h2_j = relu(sum_k w2[j,k] * h1_k + b2[j]) ----
    h2 = []
    for j in range(6):
        acc = h1[0] * w2(j, 0)
        for k in range(1, 6):
            acc = acc + h1[k] * w2(j, k)
        h2.append(jnp.maximum(acc + b2(j), 0.0))

    # ---- fc3: o = sum_k w3[k] * h2_k + b3 ----
    o = h2[0] * w3(0)
    for k in range(1, 6):
        o = o + h2[k] * w3(k)
    o_ref[...] = (o + b3).astype(o_ref.dtype)


@functools.partial(jax.jit, static_argnames=("tb",))
def _net_forward_impl(x, packed_params, *, tb):
    """x: (B, 4) f32, packed_params: (128,) f32, tb: static batch tile (mult of 1024)."""
    B = x.shape[0]
    Bp = pl.cdiv(B, tb) * tb                           # pad batch to a tile multiple
    S = tb // 128

    # Layout plumbing (ideally done by the producer): batch-major (B,4) ->
    # feature-major per-feature dense slabs (4, Bp//128, 128).
    xt = jnp.pad(x, ((0, Bp - B), (0, 0))).T.reshape(4, Bp // 128, 128)

    out = pl.pallas_call(
        mlp_kernel,
        out_shape=jax.ShapeDtypeStruct((Bp // 128, 128), jnp.float32),
        grid_spec=pltpu.PrefetchScalarGridSpec(
            num_scalar_prefetch=0,
            grid=(Bp // tb,),
            in_specs=[
                # Packed parameters: whole array resident in SMEM, read as scalars.
                pl.BlockSpec(memory_space=pltpu.MemorySpace.SMEM),
                # x: per-feature batch-dense slabs, batch is the pipelined axis.
                pl.BlockSpec((4, S, 128), lambda i: (0, i, 0)),
            ],
            out_specs=pl.BlockSpec((S, 128), lambda i: (i, 0)),
        ),
        compiler_params=pltpu.CompilerParams(
            dimension_semantics=("parallel",),
        ),
        cost_estimate=pl.CostEstimate(
            flops=2 * (4 * 6 + 6 * 6 + 6 * 1) * Bp,    # ~132 flops / element
            transcendentals=0,
            bytes_accessed=(4 + 1) * 4 * Bp,           # ~20 B / element
        ),
    )(packed_params, xt)

    # Padded lanes compute relu(bias) garbage; slice them off.
    return out.reshape(Bp)[:B].reshape(B, 1)


def net_forward(x, packed_params, *, tb=32768):
    """Forward pass of Net.  x: (B, 4) f32 -> (B, 1) f32."""
    B = x.shape[0]
    bp_min = -(-B // _MIN_TB) * _MIN_TB                # batch rounded up to 1024
    tb_eff = max(_MIN_TB, (min(tb, bp_min) // _MIN_TB) * _MIN_TB)
    return _net_forward_impl(x, packed_params, tb=tb_eff)


def init_params(key):
    """PyTorch-shaped params: weight (out, in), bias (out,), nn.Linear-style init."""
    def linear(key, fan_in, fan_out):
        kw, kb = jax.random.split(key)
        bound = 1.0 / jnp.sqrt(jnp.float32(fan_in))
        w = jax.random.uniform(kw, (fan_out, fan_in), jnp.float32, -bound, bound)
        b = jax.random.uniform(kb, (fan_out,), jnp.float32, -bound, bound)
        return w, b

    k1, k2, k3 = jax.random.split(key, 3)
    w1, b1 = linear(k1, 4, 6)
    w2, b2 = linear(k2, 6, 6)
    w3, b3 = linear(k3, 6, 1)
    return {"w1": w1, "b1": b1, "w2": w2, "b2": b2, "w3": w3, "b3": b3}


def pack_params(raw):
    """Pack all weights/biases into one 1-D (128,) f32 array for SMEM scalar reads."""
    p = jnp.zeros((_P_LEN,), jnp.float32)
    p = p.at[_W1_OFF:_W1_OFF + 24].set(raw["w1"].reshape(-1))
    p = p.at[_B1_OFF:_B1_OFF + 6].set(raw["b1"])
    p = p.at[_W2_OFF:_W2_OFF + 36].set(raw["w2"].reshape(-1))
    p = p.at[_B2_OFF:_B2_OFF + 6].set(raw["b2"])
    p = p.at[_W3_OFF:_W3_OFF + 6].set(raw["w3"][0, :])
    p = p.at[_B3_OFF].set(raw["b3"][0])
    return p


def net_forward_ref(x, raw):
    h1 = jnp.maximum(x @ raw["w1"].T + raw["b1"], 0.0)
    h2 = jnp.maximum(h1 @ raw["w2"].T + raw["b2"], 0.0)
    return h2 @ raw["w3"].T + raw["b3"]


if __name__ == "__main__":
    key = jax.random.PRNGKey(0)
    kx, kx2, kp = jax.random.split(key, 3)

    raw = init_params(kp)
    packed = pack_params(raw)

    # Small-shape check (single grid step; exercises batch padding).
    B = 200
    x = jax.random.normal(kx, (B, 4), jnp.float32)
    out = jax.block_until_ready(net_forward(x, packed))
    ref = net_forward_ref(x, raw)
    assert out.shape == (B, 1)
    assert jnp.allclose(out, ref, atol=1e-5, rtol=1e-5)

    # Multi-step pipelined grid check (forced small tile -> 3 grid steps).
    B2 = 3000
    x2 = jax.random.normal(kx2, (B2, 4), jnp.float32)
    out2 = jax.block_until_ready(net_forward(x2, packed, tb=1024))
    assert jnp.allclose(out2, net_forward_ref(x2, raw), atol=1e-5, rtol=1e-5)

    print("KERNEL_OK")
</pallas_src>

<mosaic_0001>
module attributes {stable_mosaic.version = 11 : i64} {
  func.func @mlp_kernel(%arg0: i32, %arg1: memref<128xf32, #tpu.memory_space<smem>>, %arg2: memref<4x8x128xf32, #tpu.memory_space<vmem>>, %arg3: memref<8x128xf32, #tpu.memory_space<vmem>>) attributes {dimension_semantics = [#tpu.dimension_semantics<parallel>], iteration_bounds = array<i64: 1>, scalar_prefetch = 0 : i64, scratch_operands = 0 : i64, tpu.core_type = #tpu.core_type<tc>, window_params = [{transform_indices = @transform_0, window_bounds = array<i64: 128>}, {transform_indices = @transform_1, window_bounds = array<i64: 4, 8, 128>}, {transform_indices = @transform_2, window_bounds = array<i64: 8, 128>}]} {
    %c80 = arith.constant 80 : index
    %0 = memref.load %arg1[%c80] : memref<128xf32, #tpu.memory_space<smem>>
    %c0 = arith.constant 0 : index
    %c0_0 = arith.constant 0 : index
    %c0_1 = arith.constant 0 : index
    %1 = vector.load %arg2[%c0, %c0_0, %c0_1] : memref<4x8x128xf32, #tpu.memory_space<vmem>>, vector<1x8x128xf32>
    %2 = vector.shape_cast %1 : vector<1x8x128xf32> to vector<8x128xf32>
    %c1 = arith.constant 1 : index
    %c0_2 = arith.constant 0 : index
    %c0_3 = arith.constant 0 : index
    %3 = vector.load %arg2[%c1, %c0_2, %c0_3] : memref<4x8x128xf32, #tpu.memory_space<vmem>>, vector<1x8x128xf32>
    %4 = vector.shape_cast %3 : vector<1x8x128xf32> to vector<8x128xf32>
    %c2 = arith.constant 2 : index
    %c0_4 = arith.constant 0 : index
    %c0_5 = arith.constant 0 : index
    %5 = vector.load %arg2[%c2, %c0_4, %c0_5] : memref<4x8x128xf32, #tpu.memory_space<vmem>>, vector<1x8x128xf32>
    %6 = vector.shape_cast %5 : vector<1x8x128xf32> to vector<8x128xf32>
    %c3 = arith.constant 3 : index
    %c0_6 = arith.constant 0 : index
    %c0_7 = arith.constant 0 : index
    %7 = vector.load %arg2[%c3, %c0_6, %c0_7] : memref<4x8x128xf32, #tpu.memory_space<vmem>>, vector<1x8x128xf32>
    %8 = vector.shape_cast %7 : vector<1x8x128xf32> to vector<8x128xf32>
    %c0_8 = arith.constant 0 : index
    %9 = memref.load %arg1[%c0_8] : memref<128xf32, #tpu.memory_space<smem>>
    %10 = vector.broadcast %9 : f32 to vector<8x128xf32>
    %11 = arith.mulf %2, %10 : vector<8x128xf32>
    %c1_9 = arith.constant 1 : index
    %12 = memref.load %arg1[%c1_9] : memref<128xf32, #tpu.memory_space<smem>>
    %13 = vector.broadcast %12 : f32 to vector<8x128xf32>
    %14 = arith.mulf %4, %13 : vector<8x128xf32>
    %15 = arith.addf %11, %14 : vector<8x128xf32>
    %c2_10 = arith.constant 2 : index
    %16 = memref.load %arg1[%c2_10] : memref<128xf32, #tpu.memory_space<smem>>
    %17 = vector.broadcast %16 : f32 to vector<8x128xf32>
    %18 = arith.mulf %6, %17 : vector<8x128xf32>
    %19 = arith.addf %15, %18 : vector<8x128xf32>
    %c3_11 = arith.constant 3 : index
    %20 = memref.load %arg1[%c3_11] : memref<128xf32, #tpu.memory_space<smem>>
    %21 = vector.broadcast %20 : f32 to vector<8x128xf32>
    %22 = arith.mulf %8, %21 : vector<8x128xf32>
    %23 = arith.addf %19, %22 : vector<8x128xf32>
    %c24 = arith.constant 24 : index
    %24 = memref.load %arg1[%c24] : memref<128xf32, #tpu.memory_space<smem>>
    %25 = vector.broadcast %24 : f32 to vector<8x128xf32>
    %26 = arith.addf %23, %25 : vector<8x128xf32>
    %cst = arith.constant 0.000000e+00 : f32
    %27 = vector.broadcast %cst : f32 to vector<8x128xf32>
    %28 = arith.maximumf %26, %27 : vector<8x128xf32>
    %c4 = arith.constant 4 : index
    %29 = memref.load %arg1[%c4] : memref<128xf32, #tpu.memory_space<smem>>
    %30 = vector.broadcast %29 : f32 to vector<8x128xf32>
    %31 = arith.mulf %2, %30 : vector<8x128xf32>
    %c5 = arith.constant 5 : index
    %32 = memref.load %arg1[%c5] : memref<128xf32, #tpu.memory_space<smem>>
    %33 = vector.broadcast %32 : f32 to vector<8x128xf32>
    %34 = arith.mulf %4, %33 : vector<8x128xf32>
    %35 = arith.addf %31, %34 : vector<8x128xf32>
    %c6 = arith.constant 6 : index
    %36 = memref.load %arg1[%c6] : memref<128xf32, #tpu.memory_space<smem>>
    %37 = vector.broadcast %36 : f32 to vector<8x128xf32>
    %38 = arith.mulf %6, %37 : vector<8x128xf32>
    %39 = arith.addf %35, %38 : vector<8x128xf32>
    %c7 = arith.constant 7 : index
    %40 = memref.load %arg1[%c7] : memref<128xf32, #tpu.memory_space<smem>>
    %41 = vector.broadcast %40 : f32 to vector<8x128xf32>
    %42 = arith.mulf %8, %41 : vector<8x128xf32>
    %43 = arith.addf %39, %42 : vector<8x128xf32>
    %c25 = arith.constant 25 : index
    %44 = memref.load %arg1[%c25] : memref<128xf32, #tpu.memory_space<smem>>
    %45 = vector.broadcast %44 : f32 to vector<8x128xf32>
    %46 = arith.addf %43, %45 : vector<8x128xf32>
    %cst_12 = arith.constant 0.000000e+00 : f32
    %47 = vector.broadcast %cst_12 : f32 to vector<8x128xf32>
    %48 = arith.maximumf %46, %47 : vector<8x128xf32>
    %c8 = arith.constant 8 : index
    %49 = memref.load %arg1[%c8] : memref<128xf32, #tpu.memory_space<smem>>
    %50 = vector.broadcast %49 : f32 to vector<8x128xf32>
    %51 = arith.mulf %2, %50 : vector<8x128xf32>
    %c9 = arith.constant 9 : index
    %52 = memref.load %arg1[%c9] : memref<128xf32, #tpu.memory_space<smem>>
    %53 = vector.broadcast %52 : f32 to vector<8x128xf32>
    %54 = arith.mulf %4, %53 : vector<8x128xf32>
    %55 = arith.addf %51, %54 : vector<8x128xf32>
    %c10 = arith.constant 10 : index
    %56 = memref.load %arg1[%c10] : memref<128xf32, #tpu.memory_space<smem>>
    %57 = vector.broadcast %56 : f32 to vector<8x128xf32>
    %58 = arith.mulf %6, %57 : vector<8x128xf32>
    %59 = arith.addf %55, %58 : vector<8x128xf32>
    %c11 = arith.constant 11 : index
    %60 = memref.load %arg1[%c11] : memref<128xf32, #tpu.memory_space<smem>>
    %61 = vector.broadcast %60 : f32 to vector<8x128xf32>
    %62 = arith.mulf %8, %61 : vector<8x128xf32>
    %63 = arith.addf %59, %62 : vector<8x128xf32>
    %c26 = arith.constant 26 : index
    %64 = memref.load %arg1[%c26] : memref<128xf32, #tpu.memory_space<smem>>
    %65 = vector.broadcast %64 : f32 to vector<8x128xf32>
    %66 = arith.addf %63, %65 : vector<8x128xf32>
    %cst_13 = arith.constant 0.000000e+00 : f32
    %67 = vector.broadcast %cst_13 : f32 to vector<8x128xf32>
    %68 = arith.maximumf %66, %67 : vector<8x128xf32>
    %c12 = arith.constant 12 : index
    %69 = memref.load %arg1[%c12] : memref<128xf32, #tpu.memory_space<smem>>
    %70 = vector.broadcast %69 : f32 to vector<8x128xf32>
    %71 = arith.mulf %2, %70 : vector<8x128xf32>
    %c13 = arith.constant 13 : index
    %72 = memref.load %arg1[%c13] : memref<128xf32, #tpu.memory_space<smem>>
    %73 = vector.broadcast %72 : f32 to vector<8x128xf32>
    %74 = arith.mulf %4, %73 : vector<8x128xf32>
    %75 = arith.addf %71, %74 : vector<8x128xf32>
    %c14 = arith.constant 14 : index
    %76 = memref.load %arg1[%c14] : memref<128xf32, #tpu.memory_space<smem>>
    %77 = vector.broadcast %76 : f32 to vector<8x128xf32>
    %78 = arith.mulf %6, %77 : vector<8x128xf32>
    %79 = arith.addf %75, %78 : vector<8x128xf32>
    %c15 = arith.constant 15 : index
    %80 = memref.load %arg1[%c15] : memref<128xf32, #tpu.memory_space<smem>>
    %81 = vector.broadcast %80 : f32 to vector<8x128xf32>
    %82 = arith.mulf %8, %81 : vector<8x128xf32>
    %83 = arith.addf %79, %82 : vector<8x128xf32>
    %c27 = arith.constant 27 : index
    %84 = memref.load %arg1[%c27] : memref<128xf32, #tpu.memory_space<smem>>
    %85 = vector.broadcast %84 : f32 to vector<8x128xf32>
    %86 = arith.addf %83, %85 : vector<8x128xf32>
    %cst_14 = arith.constant 0.000000e+00 : f32
    %87 = vector.broadcast %cst_14 : f32 to vector<8x128xf32>
    %88 = arith.maximumf %86, %87 : vector<8x128xf32>
    %c16 = arith.constant 16 : index
    %89 = memref.load %arg1[%c16] : memref<128xf32, #tpu.memory_space<smem>>
    %90 = vector.broadcast %89 : f32 to vector<8x128xf32>
    %91 = arith.mulf %2, %90 : vector<8x128xf32>
    %c17 = arith.constant 17 : index
    %92 = memref.load %arg1[%c17] : memref<128xf32, #tpu.memory_space<smem>>
    %93 = vector.broadcast %92 : f32 to vector<8x128xf32>
    %94 = arith.mulf %4, %93 : vector<8x128xf32>
    %95 = arith.addf %91, %94 : vector<8x128xf32>
    %c18 = arith.constant 18 : index
    %96 = memref.load %arg1[%c18] : memref<128xf32, #tpu.memory_space<smem>>
    %97 = vector.broadcast %96 : f32 to vector<8x128xf32>
    %98 = arith.mulf %6, %97 : vector<8x128xf32>
    %99 = arith.addf %95, %98 : vector<8x128xf32>
    %c19 = arith.constant 19 : index
    %100 = memref.load %arg1[%c19] : memref<128xf32, #tpu.memory_space<smem>>
    %101 = vector.broadcast %100 : f32 to vector<8x128xf32>
    %102 = arith.mulf %8, %101 : vector<8x128xf32>
    %103 = arith.addf %99, %102 : vector<8x128xf32>
    %c28 = arith.constant 28 : index
    %104 = memref.load %arg1[%c28] : memref<128xf32, #tpu.memory_space<smem>>
    %105 = vector.broadcast %104 : f32 to vector<8x128xf32>
    %106 = arith.addf %103, %105 : vector<8x128xf32>
    %cst_15 = arith.constant 0.000000e+00 : f32
    %107 = vector.broadcast %cst_15 : f32 to vector<8x128xf32>
    %108 = arith.maximumf %106, %107 : vector<8x128xf32>
    %c20 = arith.constant 20 : index
    %109 = memref.load %arg1[%c20] : memref<128xf32, #tpu.memory_space<smem>>
    %110 = vector.broadcast %109 : f32 to vector<8x128xf32>
    %111 = arith.mulf %2, %110 : vector<8x128xf32>
    %c21 = arith.constant 21 : index
    %112 = memref.load %arg1[%c21] : memref<128xf32, #tpu.memory_space<smem>>
    %113 = vector.broadcast %112 : f32 to vector<8x128xf32>
    %114 = arith.mulf %4, %113 : vector<8x128xf32>
    %115 = arith.addf %111, %114 : vector<8x128xf32>
    %c22 = arith.constant 22 : index
    %116 = memref.load %arg1[%c22] : memref<128xf32, #tpu.memory_space<smem>>
    %117 = vector.broadcast %116 : f32 to vector<8x128xf32>
    %118 = arith.mulf %6, %117 : vector<8x128xf32>
    %119 = arith.addf %115, %118 : vector<8x128xf32>
    %c23 = arith.constant 23 : index
    %120 = memref.load %arg1[%c23] : memref<128xf32, #tpu.memory_space<smem>>
    %121 = vector.broadcast %120 : f32 to vector<8x128xf32>
    %122 = arith.mulf %8, %121 : vector<8x128xf32>
    %123 = arith.addf %119, %122 : vector<8x128xf32>
    %c29 = arith.constant 29 : index
    %124 = memref.load %arg1[%c29] : memref<128xf32, #tpu.memory_space<smem>>
    %125 = vector.broadcast %124 : f32 to vector<8x128xf32>
    %126 = arith.addf %123, %125 : vector<8x128xf32>
    %cst_16 = arith.constant 0.000000e+00 : f32
    %127 = vector.broadcast %cst_16 : f32 to vector<8x128xf32>
    %128 = arith.maximumf %126, %127 : vector<8x128xf32>
    %c32 = arith.constant 32 : index
    %129 = memref.load %arg1[%c32] : memref<128xf32, #tpu.memory_space<smem>>
    %130 = vector.broadcast %129 : f32 to vector<8x128xf32>
    %131 = arith.mulf %28, %130 : vector<8x128xf32>
    %c33 = arith.constant 33 : index
    %132 = memref.load %arg1[%c33] : memref<128xf32, #tpu.memory_space<smem>>
    %133 = vector.broadcast %132 : f32 to vector<8x128xf32>
    %134 = arith.mulf %48, %133 : vector<8x128xf32>
    %135 = arith.addf %131, %134 : vector<8x128xf32>
    %c34 = arith.constant 34 : index
    %136 = memref.load %arg1[%c34] : memref<128xf32, #tpu.memory_space<smem>>
    %137 = vector.broadcast %136 : f32 to vector<8x128xf32>
    %138 = arith.mulf %68, %137 : vector<8x128xf32>
    %139 = arith.addf %135, %138 : vector<8x128xf32>
    %c35 = arith.constant 35 : index
    %140 = memref.load %arg1[%c35] : memref<128xf32, #tpu.memory_space<smem>>
    %141 = vector.broadcast %140 : f32 to vector<8x128xf32>
    %142 = arith.mulf %88, %141 : vector<8x128xf32>
    %143 = arith.addf %139, %142 : vector<8x128xf32>
    %c36 = arith.constant 36 : index
    %144 = memref.load %arg1[%c36] : memref<128xf32, #tpu.memory_space<smem>>
    %145 = vector.broadcast %144 : f32 to vector<8x128xf32>
    %146 = arith.mulf %108, %145 : vector<8x128xf32>
    %147 = arith.addf %143, %146 : vector<8x128xf32>
    %c37 = arith.constant 37 : index
    %148 = memref.load %arg1[%c37] : memref<128xf32, #tpu.memory_space<smem>>
    %149 = vector.broadcast %148 : f32 to vector<8x128xf32>
    %150 = arith.mulf %128, %149 : vector<8x128xf32>
    %151 = arith.addf %147, %150 : vector<8x128xf32>
    %c68 = arith.constant 68 : index
    %152 = memref.load %arg1[%c68] : memref<128xf32, #tpu.memory_space<smem>>
    %153 = vector.broadcast %152 : f32 to vector<8x128xf32>
    %154 = arith.addf %151, %153 : vector<8x128xf32>
    %cst_17 = arith.constant 0.000000e+00 : f32
    %155 = vector.broadcast %cst_17 : f32 to vector<8x128xf32>
    %156 = arith.maximumf %154, %155 : vector<8x128xf32>
    %c38 = arith.constant 38 : index
    %157 = memref.load %arg1[%c38] : memref<128xf32, #tpu.memory_space<smem>>
    %158 = vector.broadcast %157 : f32 to vector<8x128xf32>
    %159 = arith.mulf %28, %158 : vector<8x128xf32>
    %c39 = arith.constant 39 : index
    %160 = memref.load %arg1[%c39] : memref<128xf32, #tpu.memory_space<smem>>
    %161 = vector.broadcast %160 : f32 to vector<8x128xf32>
    %162 = arith.mulf %48, %161 : vector<8x128xf32>
    %163 = arith.addf %159, %162 : vector<8x128xf32>
    %c40 = arith.constant 40 : index
    %164 = memref.load %arg1[%c40] : memref<128xf32, #tpu.memory_space<smem>>
    %165 = vector.broadcast %164 : f32 to vector<8x128xf32>
    %166 = arith.mulf %68, %165 : vector<8x128xf32>
    %167 = arith.addf %163, %166 : vector<8x128xf32>
    %c41 = arith.constant 41 : index
    %168 = memref.load %arg1[%c41] : memref<128xf32, #tpu.memory_space<smem>>
    %169 = vector.broadcast %168 : f32 to vector<8x128xf32>
    %170 = arith.mulf %88, %169 : vector<8x128xf32>
    %171 = arith.addf %167, %170 : vector<8x128xf32>
    %c42 = arith.constant 42 : index
    %172 = memref.load %arg1[%c42] : memref<128xf32, #tpu.memory_space<smem>>
    %173 = vector.broadcast %172 : f32 to vector<8x128xf32>
    %174 = arith.mulf %108, %173 : vector<8x128xf32>
    %175 = arith.addf %171, %174 : vector<8x128xf32>
    %c43 = arith.constant 43 : index
    %176 = memref.load %arg1[%c43] : memref<128xf32, #tpu.memory_space<smem>>
    %177 = vector.broadcast %176 : f32 to vector<8x128xf32>
    %178 = arith.mulf %128, %177 : vector<8x128xf32>
    %179 = arith.addf %175, %178 : vector<8x128xf32>
    %c69 = arith.constant 69 : index
    %180 = memref.load %arg1[%c69] : memref<128xf32, #tpu.memory_space<smem>>
    %181 = vector.broadcast %180 : f32 to vector<8x128xf32>
    %182 = arith.addf %179, %181 : vector<8x128xf32>
    %cst_18 = arith.constant 0.000000e+00 : f32
    %183 = vector.broadcast %cst_18 : f32 to vector<8x128xf32>
    %184 = arith.maximumf %182, %183 : vector<8x128xf32>
    %c44 = arith.constant 44 : index
    %185 = memref.load %arg1[%c44] : memref<128xf32, #tpu.memory_space<smem>>
    %186 = vector.broadcast %185 : f32 to vector<8x128xf32>
    %187 = arith.mulf %28, %186 : vector<8x128xf32>
    %c45 = arith.constant 45 : index
    %188 = memref.load %arg1[%c45] : memref<128xf32, #tpu.memory_space<smem>>
    %189 = vector.broadcast %188 : f32 to vector<8x128xf32>
    %190 = arith.mulf %48, %189 : vector<8x128xf32>
    %191 = arith.addf %187, %190 : vector<8x128xf32>
    %c46 = arith.constant 46 : index
    %192 = memref.load %arg1[%c46] : memref<128xf32, #tpu.memory_space<smem>>
    %193 = vector.broadcast %192 : f32 to vector<8x128xf32>
    %194 = arith.mulf %68, %193 : vector<8x128xf32>
    %195 = arith.addf %191, %194 : vector<8x128xf32>
    %c47 = arith.constant 47 : index
    %196 = memref.load %arg1[%c47] : memref<128xf32, #tpu.memory_space<smem>>
    %197 = vector.broadcast %196 : f32 to vector<8x128xf32>
    %198 = arith.mulf %88, %197 : vector<8x128xf32>
    %199 = arith.addf %195, %198 : vector<8x128xf32>
    %c48 = arith.constant 48 : index
    %200 = memref.load %arg1[%c48] : memref<128xf32, #tpu.memory_space<smem>>
    %201 = vector.broadcast %200 : f32 to vector<8x128xf32>
    %202 = arith.mulf %108, %201 : vector<8x128xf32>
    %203 = arith.addf %199, %202 : vector<8x128xf32>
    %c49 = arith.constant 49 : index
    %204 = memref.load %arg1[%c49] : memref<128xf32, #tpu.memory_space<smem>>
    %205 = vector.broadcast %204 : f32 to vector<8x128xf32>
    %206 = arith.mulf %128, %205 : vector<8x128xf32>
    %207 = arith.addf %203, %206 : vector<8x128xf32>
    %c70 = arith.constant 70 : index
    %208 = memref.load %arg1[%c70] : memref<128xf32, #tpu.memory_space<smem>>
    %209 = vector.broadcast %208 : f32 to vector<8x128xf32>
    %210 = arith.addf %207, %209 : vector<8x128xf32>
    %cst_19 = arith.constant 0.000000e+00 : f32
    %211 = vector.broadcast %cst_19 : f32 to vector<8x128xf32>
    %212 = arith.maximumf %210, %211 : vector<8x128xf32>
    %c50 = arith.constant 50 : index
    %213 = memref.load %arg1[%c50] : memref<128xf32, #tpu.memory_space<smem>>
    %214 = vector.broadcast %213 : f32 to vector<8x128xf32>
    %215 = arith.mulf %28, %214 : vector<8x128xf32>
    %c51 = arith.constant 51 : index
    %216 = memref.load %arg1[%c51] : memref<128xf32, #tpu.memory_space<smem>>
    %217 = vector.broadcast %216 : f32 to vector<8x128xf32>
    %218 = arith.mulf %48, %217 : vector<8x128xf32>
    %219 = arith.addf %215, %218 : vector<8x128xf32>
    %c52 = arith.constant 52 : index
    %220 = memref.load %arg1[%c52] : memref<128xf32, #tpu.memory_space<smem>>
    %221 = vector.broadcast %220 : f32 to vector<8x128xf32>
    %222 = arith.mulf %68, %221 : vector<8x128xf32>
    %223 = arith.addf %219, %222 : vector<8x128xf32>
    %c53 = arith.constant 53 : index
    %224 = memref.load %arg1[%c53] : memref<128xf32, #tpu.memory_space<smem>>
    %225 = vector.broadcast %224 : f32 to vector<8x128xf32>
    %226 = arith.mulf %88, %225 : vector<8x128xf32>
    %227 = arith.addf %223, %226 : vector<8x128xf32>
    %c54 = arith.constant 54 : index
    %228 = memref.load %arg1[%c54] : memref<128xf32, #tpu.memory_space<smem>>
    %229 = vector.broadcast %228 : f32 to vector<8x128xf32>
    %230 = arith.mulf %108, %229 : vector<8x128xf32>
    %231 = arith.addf %227, %230 : vector<8x128xf32>
    %c55 = arith.constant 55 : index
    %232 = memref.load %arg1[%c55] : memref<128xf32, #tpu.memory_space<smem>>
    %233 = vector.broadcast %232 : f32 to vector<8x128xf32>
    %234 = arith.mulf %128, %233 : vector<8x128xf32>
    %235 = arith.addf %231, %234 : vector<8x128xf32>
    %c71 = arith.constant 71 : index
    %236 = memref.load %arg1[%c71] : memref<128xf32, #tpu.memory_space<smem>>
    %237 = vector.broadcast %236 : f32 to vector<8x128xf32>
    %238 = arith.addf %235, %237 : vector<8x128xf32>
    %cst_20 = arith.constant 0.000000e+00 : f32
    %239 = vector.broadcast %cst_20 : f32 to vector<8x128xf32>
    %240 = arith.maximumf %238, %239 : vector<8x128xf32>
    %c56 = arith.constant 56 : index
    %241 = memref.load %arg1[%c56] : memref<128xf32, #tpu.memory_space<smem>>
    %242 = vector.broadcast %241 : f32 to vector<8x128xf32>
    %243 = arith.mulf %28, %242 : vector<8x128xf32>
    %c57 = arith.constant 57 : index
    %244 = memref.load %arg1[%c57] : memref<128xf32, #tpu.memory_space<smem>>
    %245 = vector.broadcast %244 : f32 to vector<8x128xf32>
    %246 = arith.mulf %48, %245 : vector<8x128xf32>
    %247 = arith.addf %243, %246 : vector<8x128xf32>
    %c58 = arith.constant 58 : index
    %248 = memref.load %arg1[%c58] : memref<128xf32, #tpu.memory_space<smem>>
    %249 = vector.broadcast %248 : f32 to vector<8x128xf32>
    %250 = arith.mulf %68, %249 : vector<8x128xf32>
    %251 = arith.addf %247, %250 : vector<8x128xf32>
    %c59 = arith.constant 59 : index
    %252 = memref.load %arg1[%c59] : memref<128xf32, #tpu.memory_space<smem>>
    %253 = vector.broadcast %252 : f32 to vector<8x128xf32>
    %254 = arith.mulf %88, %253 : vector<8x128xf32>
    %255 = arith.addf %251, %254 : vector<8x128xf32>
    %c60 = arith.constant 60 : index
    %256 = memref.load %arg1[%c60] : memref<128xf32, #tpu.memory_space<smem>>
    %257 = vector.broadcast %256 : f32 to vector<8x128xf32>
    %258 = arith.mulf %108, %257 : vector<8x128xf32>
    %259 = arith.addf %255, %258 : vector<8x128xf32>
    %c61 = arith.constant 61 : index
    %260 = memref.load %arg1[%c61] : memref<128xf32, #tpu.memory_space<smem>>
    %261 = vector.broadcast %260 : f32 to vector<8x128xf32>
    %262 = arith.mulf %128, %261 : vector<8x128xf32>
    %263 = arith.addf %259, %262 : vector<8x128xf32>
    %c72 = arith.constant 72 : index
    %264 = memref.load %arg1[%c72] : memref<128xf32, #tpu.memory_space<smem>>
    %265 = vector.broadcast %264 : f32 to vector<8x128xf32>
    %266 = arith.addf %263, %265 : vector<8x128xf32>
    %cst_21 = arith.constant 0.000000e+00 : f32
    %267 = vector.broadcast %cst_21 : f32 to vector<8x128xf32>
    %268 = arith.maximumf %266, %267 : vector<8x128xf32>
    %c62 = arith.constant 62 : index
    %269 = memref.load %arg1[%c62] : memref<128xf32, #tpu.memory_space<smem>>
    %270 = vector.broadcast %269 : f32 to vector<8x128xf32>
    %271 = arith.mulf %28, %270 : vector<8x128xf32>
    %c63 = arith.constant 63 : index
    %272 = memref.load %arg1[%c63] : memref<128xf32, #tpu.memory_space<smem>>
    %273 = vector.broadcast %272 : f32 to vector<8x128xf32>
    %274 = arith.mulf %48, %273 : vector<8x128xf32>
    %275 = arith.addf %271, %274 : vector<8x128xf32>
    %c64 = arith.constant 64 : index
    %276 = memref.load %arg1[%c64] : memref<128xf32, #tpu.memory_space<smem>>
    %277 = vector.broadcast %276 : f32 to vector<8x128xf32>
    %278 = arith.mulf %68, %277 : vector<8x128xf32>
    %279 = arith.addf %275, %278 : vector<8x128xf32>
    %c65 = arith.constant 65 : index
    %280 = memref.load %arg1[%c65] : memref<128xf32, #tpu.memory_space<smem>>
    %281 = vector.broadcast %280 : f32 to vector<8x128xf32>
    %282 = arith.mulf %88, %281 : vector<8x128xf32>
    %283 = arith.addf %279, %282 : vector<8x128xf32>
    %c66 = arith.constant 66 : index
    %284 = memref.load %arg1[%c66] : memref<128xf32, #tpu.memory_space<smem>>
    %285 = vector.broadcast %284 : f32 to vector<8x128xf32>
    %286 = arith.mulf %108, %285 : vector<8x128xf32>
    %287 = arith.addf %283, %286 : vector<8x128xf32>
    %c67 = arith.constant 67 : index
    %288 = memref.load %arg1[%c67] : memref<128xf32, #tpu.memory_space<smem>>
    %289 = vector.broadcast %288 : f32 to vector<8x128xf32>
    %290 = arith.mulf %128, %289 : vector<8x128xf32>
    %291 = arith.addf %287, %290 : vector<8x128xf32>
    %c73 = arith.constant 73 : index
    %292 = memref.load %arg1[%c73] : memref<128xf32, #tpu.memory_space<smem>>
    %293 = vector.broadcast %292 : f32 to vector<8x128xf32>
    %294 = arith.addf %291, %293 : vector<8x128xf32>
    %cst_22 = arith.constant 0.000000e+00 : f32
    %295 = vector.broadcast %cst_22 : f32 to vector<8x128xf32>
    %296 = arith.maximumf %294, %295 : vector<8x128xf32>
    %c74 = arith.constant 74 : index
    %297 = memref.load %arg1[%c74] : memref<128xf32, #tpu.memory_space<smem>>
    %298 = vector.broadcast %297 : f32 to vector<8x128xf32>
    %299 = arith.mulf %156, %298 : vector<8x128xf32>
    %c75 = arith.constant 75 : index
    %300 = memref.load %arg1[%c75] : memref<128xf32, #tpu.memory_space<smem>>
    %301 = vector.broadcast %300 : f32 to vector<8x128xf32>
    %302 = arith.mulf %184, %301 : vector<8x128xf32>
    %303 = arith.addf %299, %302 : vector<8x128xf32>
    %c76 = arith.constant 76 : index
    %304 = memref.load %arg1[%c76] : memref<128xf32, #tpu.memory_space<smem>>
    %305 = vector.broadcast %304 : f32 to vector<8x128xf32>
    %306 = arith.mulf %212, %305 : vector<8x128xf32>
    %307 = arith.addf %303, %306 : vector<8x128xf32>
    %c77 = arith.constant 77 : index
    %308 = memref.load %arg1[%c77] : memref<128xf32, #tpu.memory_space<smem>>
    %309 = vector.broadcast %308 : f32 to vector<8x128xf32>
    %310 = arith.mulf %240, %309 : vector<8x128xf32>
    %311 = arith.addf %307, %310 : vector<8x128xf32>
    %c78 = arith.constant 78 : index
    %312 = memref.load %arg1[%c78] : memref<128xf32, #tpu.memory_space<smem>>
    %313 = vector.broadcast %312 : f32 to vector<8x128xf32>
    %314 = arith.mulf %268, %313 : vector<8x128xf32>
    %315 = arith.addf %311, %314 : vector<8x128xf32>
    %c79 = arith.constant 79 : index
    %316 = memref.load %arg1[%c79] : memref<128xf32, #tpu.memory_space<smem>>
    %317 = vector.broadcast %316 : f32 to vector<8x128xf32>
    %318 = arith.mulf %296, %317 : vector<8x128xf32>
    %319 = arith.addf %315, %318 : vector<8x128xf32>
    %320 = vector.broadcast %0 : f32 to vector<8x128xf32>
    %321 = arith.addf %319, %320 : vector<8x128xf32>
    %c0_23 = arith.constant 0 : index
    %c0_24 = arith.constant 0 : index
    %322 = vector.load %arg3[%c0_23, %c0_24] : memref<8x128xf32, #tpu.memory_space<vmem>>, vector<8x128xf32>
    tpu.vector_store %arg3[%c0_23, %c0_24], %321 {strides = array<i32>} : memref<8x128xf32, #tpu.memory_space<vmem>>, vector<8x128xf32>,
    return
  }
  func.func @transform_0(%arg0: i32) -> i32 {
    %c0_i32 = arith.constant 0 : i32
    %c0_i32_0 = arith.constant 0 : i32
    return %c0_i32 : i32
  }
  func.func @transform_1(%arg0: i32) -> (i32, i32, i32) {
    %c0_i32 = arith.constant 0 : i32
    %c0_i32_0 = arith.constant 0 : i32
    %c0_i32_1 = arith.constant 0 : i32
    return %c0_i32, %arg0, %c0_i32_0 : i32, i32, i32
  }
  func.func @transform_2(%arg0: i32) -> (i32, i32) {
    %c0_i32 = arith.constant 0 : i32
    %c0_i32_0 = arith.constant 0 : i32
    return %arg0, %c0_i32 : i32, i32
  }
}

</mosaic_0001>

<llo_original>
// kernel: _net_forward_impl.1
$region0: #{_net_forward_impl.1}
  #allocation0 [shape = 'u32[]', space=smem, size = 0x4, offset = 0x4, fixed_abs, tag = 'smem constant byte address 0x4 - core index']
  #allocation1 [shape = 'u32[144,128]{1,0:T(1,128)}', space=vmem, size = 0x12000, scoped, tag = 'internal scratch']
  %s0 = inlined_call_operand.vmem [shape: f32[128], index: 0, kind: input, shape index: {}]
  %s1 = inlined_call_operand.vmem [shape: f32[4,8,128], index: 1, kind: input, shape index: {}]
  %s2 = inlined_call_operand.vmem [shape: f32[8,128], index: 2, kind: output, shape index: {}]
  %s3 = sld [smem:[#allocation0]]
  $region22: #{_net_forward_impl.1} parent=0
    _
  %s5 = ssub.s32 1, %s3
  %s6 = scalar_select 0, %s5, %s3
  $region1: #{_net_forward_impl.1} parent=0
    #allocation2 [shape = 'u8[512]{0}', space=smem, size = 0x200, scoped, tag = 'input window, operand 0, single buffered']
    #allocation3 [shape = 's32[1]{0}', space=sflag, size = 0x4, scoped, tag = 'scoped memory for _net_forward_impl.1']
    %7 = vsyncpa [#allocation3], 0
    // Predicated region
    $region2: #{_net_forward_impl.1} parent=1 // pred_check
      _
    $region3: #{_net_forward_impl.1} parent=1 // pred_check_branch
      %9 = sbr.rel (0) target = $region5
    $region4: #{_net_forward_impl.1} parent=1 // pred_region
      %s11 = ssub.s32 16, 16
      %12 = vsyncadd [#allocation3], %s11
      %s14 = sshll.u32 %s0, 4
      %s15 = int_to_ptr.vmem [resolvable:$true] %s14
      %17 = dma.vmem_to_smem %s15, 16, [#allocation2], [#allocation3]
    $region5: #{_net_forward_impl.1} parent=1 // pred_fallthru
      _
    // Predicated region
    $region6: #{_net_forward_impl.1} parent=1 // pred_check
      _
    $region7: #{_net_forward_impl.1} parent=1 // pred_check_branch
      %19 = sbr.rel (0) target = $region9
    $region8: #{_net_forward_impl.1} parent=1 // pred_region
      _
    $region9: #{_net_forward_impl.1} parent=1 // pred_fallthru
      _
    // Predicated region
    $region10: #{_net_forward_impl.1} parent=1 // pred_check
      _
    $region11: #{_net_forward_impl.1} parent=1 // pred_check_branch
      %21 = sbr.rel (0) target = $region13
    $region12: #{_net_forward_impl.1} parent=1 // pred_region
      %22 = dma.done [#allocation3], 16
    $region13: #{_net_forward_impl.1} parent=1 // pred_fallthru
      _
    %23 = sfence
    %s24 = sld [smem:[#allocation2 + $0x50]]
    %v25 = vld [vmem:[%s1] sm:$0xff]
    %s26 = scalar_lea.vmem %s1, 8
    %v27 = vld [vmem:[%s26] sm:$0xff]
    %s28 = scalar_lea.vmem %s1, 16
    %v29 = vld [vmem:[%s28] sm:$0xff]
    %s30 = scalar_lea.vmem %s1, 24
    %v31 = vld [vmem:[%s30] sm:$0xff]
    %s32 = sld [smem:[#allocation2]]
    %v33 = vstv %s32
    %v34 = vmul.f32 %v25, %v33
    %s35 = sld [smem:[#allocation2 + $0x1]]
    %v36 = vstv %s35
    %v37 = vmul.f32 %v27, %v36
    %v38 = vadd.f32 %v34, %v37
    %s39 = sld [smem:[#allocation2 + $0x2]]
    %v40 = vstv %s39
    %v41 = vmul.f32 %v29, %v40
    %v42 = vadd.f32 %v38, %v41
    %s43 = sld [smem:[#allocation2 + $0x3]]
    %v44 = vstv %s43
    %v45 = vmul.f32 %v31, %v44
    %v46 = vadd.f32 %v42, %v45
    %s47 = sld [smem:[#allocation2 + $0x18]]
    %v48 = vstv %s47
    %v49 = vadd.f32 %v46, %v48
    %v50 = vmax.f32 %v49, 0.0
    %s51 = sld [smem:[#allocation2 + $0x4]]
    %v52 = vstv %s51
    %v53 = vmul.f32 %v25, %v52
    %s54 = sld [smem:[#allocation2 + $0x5]]
    %v55 = vstv %s54
    %v56 = vmul.f32 %v27, %v55
    %v57 = vadd.f32 %v53, %v56
    %s58 = sld [smem:[#allocation2 + $0x6]]
    %v59 = vstv %s58
    %v60 = vmul.f32 %v29, %v59
    %v61 = vadd.f32 %v57, %v60
    %s62 = sld [smem:[#allocation2 + $0x7]]
    %v63 = vstv %s62
    %v64 = vmul.f32 %v31, %v63
    %v65 = vadd.f32 %v61, %v64
    %s66 = sld [smem:[#allocation2 + $0x19]]
    %v67 = vstv %s66
    %v68 = vadd.f32 %v65, %v67
    %v69 = vmax.f32 %v68, 0.0
    %s70 = sld [smem:[#allocation2 + $0x8]]
    %v71 = vstv %s70
    %v72 = vmul.f32 %v25, %v71
    %s73 = sld [smem:[#allocation2 + $0x9]]
    %v74 = vstv %s73
    %v75 = vmul.f32 %v27, %v74
    %v76 = vadd.f32 %v72, %v75
    %s77 = sld [smem:[#allocation2 + $0xa]]
    %v78 = vstv %s77
    %v79 = vmul.f32 %v29, %v78
    %v80 = vadd.f32 %v76, %v79
    %s81 = sld [smem:[#allocation2 + $0xb]]
    %v82 = vstv %s81
    %v83 = vmul.f32 %v31, %v82
    %v84 = vadd.f32 %v80, %v83
    %s85 = sld [smem:[#allocation2 + $0x1a]]
    %v86 = vstv %s85
    %v87 = vadd.f32 %v84, %v86
    %v88 = vmax.f32 %v87, 0.0
    %s89 = sld [smem:[#allocation2 + $0xc]]
    %v90 = vstv %s89
    %v91 = vmul.f32 %v25, %v90
    %s92 = sld [smem:[#allocation2 + $0xd]]
    %v93 = vstv %s92
    %v94 = vmul.f32 %v27, %v93
    %v95 = vadd.f32 %v91, %v94
    %s96 = sld [smem:[#allocation2 + $0xe]]
    %v97 = vstv %s96
    %v98 = vmul.f32 %v29, %v97
    %v99 = vadd.f32 %v95, %v98
    %s100 = sld [smem:[#allocation2 + $0xf]]
    %v101 = vstv %s100
    %v102 = vmul.f32 %v31, %v101
    %v103 = vadd.f32 %v99, %v102
    %s104 = sld [smem:[#allocation2 + $0x1b]]
    %v105 = vstv %s104
    %v106 = vadd.f32 %v103, %v105
    %v107 = vmax.f32 %v106, 0.0
    %s108 = sld [smem:[#allocation2 + $0x10]]
    %v109 = vstv %s108
    %v110 = vmul.f32 %v25, %v109
    %s111 = sld [smem:[#allocation2 + $0x11]]
    %v112 = vstv %s111
    %v113 = vmul.f32 %v27, %v112
    %v114 = vadd.f32 %v110, %v113
    %s115 = sld [smem:[#allocation2 + $0x12]]
    %v116 = vstv %s115
    %v117 = vmul.f32 %v29, %v116
    %v118 = vadd.f32 %v114, %v117
    %s119 = sld [smem:[#allocation2 + $0x13]]
    %v120 = vstv %s119
    %v121 = vmul.f32 %v31, %v120
    %v122 = vadd.f32 %v118, %v121
    %s123 = sld [smem:[#allocation2 + $0x1c]]
    %v124 = vstv %s123
    %v125 = vadd.f32 %v122, %v124
    %v126 = vmax.f32 %v125, 0.0
    %s127 = sld [smem:[#allocation2 + $0x14]]
    %v128 = vstv %s127
    %v129 = vmul.f32 %v25, %v128
    %s130 = sld [smem:[#allocation2 + $0x15]]
    %v131 = vstv %s130
    %v132 = vmul.f32 %v27, %v131
    %v133 = vadd.f32 %v129, %v132
    %s134 = sld [smem:[#allocation2 + $0x16]]
    %v135 = vstv %s134
    %v136 = vmul.f32 %v29, %v135
    %v137 = vadd.f32 %v133, %v136
    %s138 = sld [smem:[#allocation2 + $0x17]]
    %v139 = vstv %s138
    %v140 = vmul.f32 %v31, %v139
    %v141 = vadd.f32 %v137, %v140
    %s142 = sld [smem:[#allocation2 + $0x1d]]
    %v143 = vstv %s142
    %v144 = vadd.f32 %v141, %v143
    %v145 = vmax.f32 %v144, 0.0
    %s146 = sld [smem:[#allocation2 + $0x20]]
    %v147 = vstv %s146
    %v148 = vmul.f32 %v50, %v147
    %s149 = sld [smem:[#allocation2 + $0x21]]
    %v150 = vstv %s149
    %v151 = vmul.f32 %v69, %v150
    %v152 = vadd.f32 %v148, %v151
    %s153 = sld [smem:[#allocation2 + $0x22]]
    %v154 = vstv %s153
    %v155 = vmul.f32 %v88, %v154
    %v156 = vadd.f32 %v152, %v155
    %s157 = sld [smem:[#allocation2 + $0x23]]
    %v158 = vstv %s157
    %v159 = vmul.f32 %v107, %v158
    %v160 = vadd.f32 %v156, %v159
    %s161 = sld [smem:[#allocation2 + $0x24]]
    %v162 = vstv %s161
    %v163 = vmul.f32 %v126, %v162
    %v164 = vadd.f32 %v160, %v163
    %s165 = sld [smem:[#allocation2 + $0x25]]
    %v166 = vstv %s165
    %v167 = vmul.f32 %v145, %v166
    %v168 = vadd.f32 %v164, %v167
    %s169 = sld [smem:[#allocation2 + $0x44]]
    %v170 = vstv %s169
    %v171 = vadd.f32 %v168, %v170
    %v172 = vmax.f32 %v171, 0.0
    %s173 = sld [smem:[#allocation2 + $0x26]]
    %v174 = vstv %s173
    %v175 = vmul.f32 %v50, %v174
    %s176 = sld [smem:[#allocation2 + $0x27]]
    %v177 = vstv %s176
    %v178 = vmul.f32 %v69, %v177
    %v179 = vadd.f32 %v175, %v178
    %s180 = sld [smem:[#allocation2 + $0x28]]
    %v181 = vstv %s180
    %v182 = vmul.f32 %v88, %v181
    %v183 = vadd.f32 %v179, %v182
    %s184 = sld [smem:[#allocation2 + $0x29]]
    %v185 = vstv %s184
    %v186 = vmul.f32 %v107, %v185
    %v187 = vadd.f32 %v183, %v186
    %s188 = sld [smem:[#allocation2 + $0x2a]]
    %v189 = vstv %s188
    %v190 = vmul.f32 %v126, %v189
    %v191 = vadd.f32 %v187, %v190
    %s192 = sld [smem:[#allocation2 + $0x2b]]
    %v193 = vstv %s192
    %v194 = vmul.f32 %v145, %v193
    %v195 = vadd.f32 %v191, %v194
    %s196 = sld [smem:[#allocation2 + $0x45]]
    %v197 = vstv %s196
    %v198 = vadd.f32 %v195, %v197
    %v199 = vmax.f32 %v198, 0.0
    %s200 = sld [smem:[#allocation2 + $0x2c]]
    %v201 = vstv %s200
    %v202 = vmul.f32 %v50, %v201
    %s203 = sld [smem:[#allocation2 + $0x2d]]
    %v204 = vstv %s203
    %v205 = vmul.f32 %v69, %v204
    %v206 = vadd.f32 %v202, %v205
    %s207 = sld [smem:[#allocation2 + $0x2e]]
    %v208 = vstv %s207
    %v209 = vmul.f32 %v88, %v208
    %v210 = vadd.f32 %v206, %v209
    %s211 = sld [smem:[#allocation2 + $0x2f]]
    %v212 = vstv %s211
    %v213 = vmul.f32 %v107, %v212
    %v214 = vadd.f32 %v210, %v213
    %s215 = sld [smem:[#allocation2 + $0x30]]
    %v216 = vstv %s215
    %v217 = vmul.f32 %v126, %v216
    %v218 = vadd.f32 %v214, %v217
    %s219 = sld [smem:[#allocation2 + $0x31]]
    %v220 = vstv %s219
    %v221 = vmul.f32 %v145, %v220
    %v222 = vadd.f32 %v218, %v221
    %s223 = sld [smem:[#allocation2 + $0x46]]
    %v224 = vstv %s223
    %v225 = vadd.f32 %v222, %v224
    %v226 = vmax.f32 %v225, 0.0
    %s227 = sld [smem:[#allocation2 + $0x32]]
    %v228 = vstv %s227
    %v229 = vmul.f32 %v50, %v228
    %s230 = sld [smem:[#allocation2 + $0x33]]
    %v231 = vstv %s230
    %v232 = vmul.f32 %v69, %v231
    %v233 = vadd.f32 %v229, %v232
    %s234 = sld [smem:[#allocation2 + $0x34]]
    %v235 = vstv %s234
    %v236 = vmul.f32 %v88, %v235
    %v237 = vadd.f32 %v233, %v236
    %s238 = sld [smem:[#allocation2 + $0x35]]
    %v239 = vstv %s238
    %v240 = vmul.f32 %v107, %v239
    %v241 = vadd.f32 %v237, %v240
    %s242 = sld [smem:[#allocation2 + $0x36]]
    %v243 = vstv %s242
    %v244 = vmul.f32 %v126, %v243
    %v245 = vadd.f32 %v241, %v244
    %s246 = sld [smem:[#allocation2 + $0x37]]
    %v247 = vstv %s246
    %v248 = vmul.f32 %v145, %v247
    %v249 = vadd.f32 %v245, %v248
    %s250 = sld [smem:[#allocation2 + $0x47]]
    %v251 = vstv %s250
    %v252 = vadd.f32 %v249, %v251
    %v253 = vmax.f32 %v252, 0.0
    %s254 = sld [smem:[#allocation2 + $0x38]]
    %v255 = vstv %s254
    %v256 = vmul.f32 %v50, %v255
    %s257 = sld [smem:[#allocation2 + $0x39]]
    %v258 = vstv %s257
    %v259 = vmul.f32 %v69, %v258
    %v260 = vadd.f32 %v256, %v259
    %s261 = sld [smem:[#allocation2 + $0x3a]]
    %v262 = vstv %s261
    %v263 = vmul.f32 %v88, %v262
    %v264 = vadd.f32 %v260, %v263
    %s265 = sld [smem:[#allocation2 + $0x3b]]
    %v266 = vstv %s265
    %v267 = vmul.f32 %v107, %v266
    %v268 = vadd.f32 %v264, %v267
    %s269 = sld [smem:[#allocation2 + $0x3c]]
    %v270 = vstv %s269
    %v271 = vmul.f32 %v126, %v270
    %v272 = vadd.f32 %v268, %v271
    %s273 = sld [smem:[#allocation2 + $0x3d]]
    %v274 = vstv %s273
    %v275 = vmul.f32 %v145, %v274
    %v276 = vadd.f32 %v272, %v275
    %s277 = sld [smem:[#allocation2 + $0x48]]
    %v278 = vstv %s277
    %v279 = vadd.f32 %v276, %v278
    %v280 = vmax.f32 %v279, 0.0
    %s281 = sld [smem:[#allocation2 + $0x3e]]
    %v282 = vstv %s281
    %v283 = vmul.f32 %v50, %v282
    %s284 = sld [smem:[#allocation2 + $0x3f]]
    %v285 = vstv %s284
    %v286 = vmul.f32 %v69, %v285
    %v287 = vadd.f32 %v283, %v286
    %s288 = sld [smem:[#allocation2 + $0x40]]
    %v289 = vstv %s288
    %v290 = vmul.f32 %v88, %v289
    %v291 = vadd.f32 %v287, %v290
    %s292 = sld [smem:[#allocation2 + $0x41]]
    %v293 = vstv %s292
    %v294 = vmul.f32 %v107, %v293
    %v295 = vadd.f32 %v291, %v294
    %s296 = sld [smem:[#allocation2 + $0x42]]
    %v297 = vstv %s296
    %v298 = vmul.f32 %v126, %v297
    %v299 = vadd.f32 %v295, %v298
    %s300 = sld [smem:[#allocation2 + $0x43]]
    %v301 = vstv %s300
    %v302 = vmul.f32 %v145, %v301
    %v303 = vadd.f32 %v299, %v302
    %s304 = sld [smem:[#allocation2 + $0x49]]
    %v305 = vstv %s304
    %v306 = vadd.f32 %v303, %v305
    %v307 = vmax.f32 %v306, 0.0
    %s308 = sld [smem:[#allocation2 + $0x4a]]
    %v309 = vstv %s308
    %v310 = vmul.f32 %v172, %v309
    %s311 = sld [smem:[#allocation2 + $0x4b]]
    %v312 = vstv %s311
    %v313 = vmul.f32 %v199, %v312
    %v314 = vadd.f32 %v310, %v313
    %s315 = sld [smem:[#allocation2 + $0x4c]]
    %v316 = vstv %s315
    %v317 = vmul.f32 %v226, %v316
    %v318 = vadd.f32 %v314, %v317
    %s319 = sld [smem:[#allocation2 + $0x4d]]
    %v320 = vstv %s319
    %v321 = vmul.f32 %v253, %v320
    %v322 = vadd.f32 %v318, %v321
    %s323 = sld [smem:[#allocation2 + $0x4e]]
    %v324 = vstv %s323
    %v325 = vmul.f32 %v280, %v324
    %v326 = vadd.f32 %v322, %v325
    %s327 = sld [smem:[#allocation2 + $0x4f]]
    %v328 = vstv %s327
    %v329 = vmul.f32 %v307, %v328
    %v330 = vadd.f32 %v326, %v329
    %v331 = vstv %s24
    %v332 = vadd.f32 %v330, %v331
    %333 = vst [vmem:[%s2] sm:$0xff] %v332
    // Predicated region
    $region14: #{_net_forward_impl.1} parent=1 // pred_check
      _
    $region15: #{_net_forward_impl.1} parent=1 // pred_check_branch
      %335 = sbr.rel (0) target = $region17
    $region16: #{_net_forward_impl.1} parent=1 // pred_region
      _
    $region17: #{_net_forward_impl.1} parent=1 // pred_fallthru
      _
    // Predicated region
    $region18: #{_net_forward_impl.1} parent=1 // pred_check
      _
    $region19: #{_net_forward_impl.1} parent=1 // pred_check_branch
      %337 = sbr.rel (0) target = $region21
    $region20: #{_net_forward_impl.1} parent=1 // pred_region
      _
    $region21: #{_net_forward_impl.1} parent=1 // pred_fallthru
      _
    %338 = vsyncpa [#allocation3], 1

</llo_original>
